<compile_context>
chip_gen: v7x
topology: tpu7x:2x2x1
jax: 0.10.0
libtpu: 0.0.40
codegen_flags: <defaults>
</compile_context>

<pallas_src>
import functools

import jax
import jax.numpy as jnp
from jax.experimental import pallas as pl
from jax.experimental.pallas import tpu as pltpu


def _block_partial_sums(logits_ref, labels_ref, conf_ref, *, inv_temperature,
                        use_confidence):
    """Per-block partial sums in the lane-dense [C, TB] layout.

    Returns (ce_sum, n_correct, correct_conf_sum, conf_sum); the last three
    are None when use_confidence is False.
    """
    logits = logits_ref[...].astype(jnp.float32)                    # [C, TB]
    labels = labels_ref[...]                                        # [1, TB] int32
    num_classes = logits.shape[0]

    cls = jax.lax.broadcasted_iota(jnp.int32, logits.shape, 0)      # class idx / sublane
    label_hit = cls == labels                                       # [C, TB]

    # ---- cross-entropy over temperature-scaled logits (sum over this block) ----
    scaled = logits * inv_temperature
    m = jnp.max(scaled, axis=0, keepdims=True)                      # [1, TB]
    picked = jnp.max(jnp.where(label_hit, scaled, -jnp.inf),
                     axis=0, keepdims=True)                         # [1, TB]
    lse = m + jnp.log(jnp.sum(jnp.exp(scaled - m), axis=0, keepdims=True))
    ce_sum = jnp.sum(lse - picked)

    if not use_confidence:
        return ce_sum, None, None, None

    conf = conf_ref[...].astype(jnp.float32)                        # [1, TB]
    # argmax over UNscaled logits == argmax over scaled logits (temperature>0),
    # so `m` is reused; first-max-index tie-break (torch.argmax) via int32 min.
    pred = jnp.min(jnp.where(scaled == m, cls, num_classes),
                   axis=0, keepdims=True)                           # [1, TB] int32
    correct = (pred == labels).astype(jnp.float32)                  # [1, TB]

    n_correct = jnp.sum(correct)
    correct_conf_sum = jnp.sum(conf * correct)
    conf_sum = jnp.sum(conf)
    return ce_sum, n_correct, correct_conf_sum, conf_sum


def _fused_loss_kernel(*refs, inv_temperature, conf_reg_weight, use_confidence,
                       batch_size):
    """Single-block path: whole loss (including finalize) in-kernel, SMEM scalar out."""
    if use_confidence:
        logits_ref, labels_ref, conf_ref, out_ref = refs
    else:
        logits_ref, labels_ref, out_ref = refs
        conf_ref = None

    ce_sum, n_correct, correct_conf_sum, conf_sum = _block_partial_sums(
        logits_ref, labels_ref, conf_ref,
        inv_temperature=inv_temperature, use_confidence=use_confidence)

    total = ce_sum * (1.0 / batch_size)

    if use_confidence:
        n_incorrect = jnp.float32(batch_size) - n_correct
        incorrect_conf_sum = conf_sum - correct_conf_sum
        # mean(1 - conf[correct]) = (n_correct - sum(conf[correct])) / n_correct
        correct_conf_loss = (n_correct - correct_conf_sum) / jnp.maximum(n_correct, 1.0)
        incorrect_conf_loss = jnp.where(
            n_incorrect > 0.0,
            incorrect_conf_sum / jnp.maximum(n_incorrect, 1.0),
            0.0)
        conf_loss = jnp.where(n_correct > 0.0,
                              correct_conf_loss + incorrect_conf_loss,
                              0.0)
        total = total + conf_reg_weight * conf_loss

    out_ref[0, 0] = total


def _partial_loss_kernel(*refs, inv_temperature, use_confidence):
    """Gridded path: per-block partial sums into a lane-aligned [1, 1, 128] row."""
    if use_confidence:
        logits_ref, labels_ref, conf_ref, out_ref = refs
    else:
        logits_ref, labels_ref, out_ref = refs
        conf_ref = None

    ce_sum, n_correct, correct_conf_sum, conf_sum = _block_partial_sums(
        logits_ref, labels_ref, conf_ref,
        inv_temperature=inv_temperature, use_confidence=use_confidence)

    lane = jax.lax.broadcasted_iota(jnp.int32, (1, 128), 1)
    row = jnp.where(lane == 0, ce_sum, 0.0)
    if use_confidence:
        row = jnp.where(lane == 1, n_correct, row)
        row = jnp.where(lane == 2, correct_conf_sum, row)
        row = jnp.where(lane == 3, conf_sum, row)
    out_ref[...] = row.reshape(1, 1, 128)


def domain_classification_loss(domain_logits, domain_labels, confidence=None, *,
                               temperature=1.0, confidence_reg_weight=0.1,
                               block_b=4096):
    """JAX/Pallas equivalent of DomainClassificationLoss.forward."""
    assert temperature > 0.0, "temperature must be positive (argmax reuse relies on it)"
    B, C = domain_logits.shape
    use_confidence = confidence is not None

    # Lane-dense presentation: classes on sublanes, batch on lanes.
    logits_t = domain_logits.T                                   # [C, B], caller dtype
    labels_row = domain_labels.astype(jnp.int32).reshape(1, B)   # [1, B]
    operands = [logits_t, labels_row]
    if use_confidence:
        operands.append(confidence.reshape(1, B))                # [1, B], caller dtype

    conf_bytes = B * confidence.dtype.itemsize if use_confidence else 0
    cost = pl.CostEstimate(
        flops=10 * B * C,
        transcendentals=B * C + B,
        bytes_accessed=B * C * domain_logits.dtype.itemsize + B * 4 + conf_bytes + 4,
    )

    inv_temperature = float(1.0 / temperature)

    if B > block_b and B % block_b == 0:
        # ---- large-B path: batch grid over lanes, per-block partials ----
        nb = B // block_b
        in_specs = [pl.BlockSpec((C, block_b), lambda i: (0, i)),
                    pl.BlockSpec((1, block_b), lambda i: (0, i))]
        if use_confidence:
            in_specs.append(pl.BlockSpec((1, block_b), lambda i: (0, i)))
        kernel = functools.partial(
            _partial_loss_kernel,
            inv_temperature=inv_temperature,
            use_confidence=use_confidence)
        partials = pl.pallas_call(
            kernel,
            out_shape=jax.ShapeDtypeStruct((nb, 1, 128), jnp.float32),
            grid=(nb,),
            in_specs=in_specs,
            out_specs=pl.BlockSpec((1, 1, 128), lambda i: (i, 0, 0)),
            compiler_params=pltpu.CompilerParams(
                dimension_semantics=("parallel",)),
            cost_estimate=cost,
        )(*operands)

        sums = jnp.sum(partials[:, 0, :], axis=0)                # [128]
        total = sums[0] / B
        if use_confidence:
            n_correct = sums[1]
            correct_conf_sum = sums[2]
            conf_sum = sums[3]
            n_incorrect = jnp.float32(B) - n_correct
            incorrect_conf_sum = conf_sum - correct_conf_sum
            correct_conf_loss = (n_correct - correct_conf_sum) / jnp.maximum(n_correct, 1.0)
            incorrect_conf_loss = jnp.where(
                n_incorrect > 0.0,
                incorrect_conf_sum / jnp.maximum(n_incorrect, 1.0),
                0.0)
            conf_loss = jnp.where(n_correct > 0.0,
                                  correct_conf_loss + incorrect_conf_loss,
                                  0.0)
            total = total + confidence_reg_weight * conf_loss
        return total

    # ---- small/medium-B path: one block, fully fused, one SMEM scalar out ----
    in_specs = [pl.BlockSpec((C, B), lambda: (0, 0)),
                pl.BlockSpec((1, B), lambda: (0, 0))]
    if use_confidence:
        in_specs.append(pl.BlockSpec((1, B), lambda: (0, 0)))
    kernel = functools.partial(
        _fused_loss_kernel,
        inv_temperature=inv_temperature,
        conf_reg_weight=float(confidence_reg_weight),
        use_confidence=use_confidence,
        batch_size=B)
    out = pl.pallas_call(
        kernel,
        out_shape=jax.ShapeDtypeStruct((1, 1), jnp.float32),
        in_specs=in_specs,
        out_specs=pl.BlockSpec(memory_space=pltpu.SMEM),
        cost_estimate=cost,
    )(*operands)
    return out[0, 0]


if __name__ == "__main__":
    key = jax.random.PRNGKey(0)
    k1, k2, k3, k4, k5, k6 = jax.random.split(key, 6)

    temperature = 1.5
    confidence_reg_weight = 0.1

    # --- pure-JAX reference (mirrors the PyTorch module) ---
    def ref_loss(logits, labels, conf):
        scaled = logits / temperature
        lse = jax.nn.logsumexp(scaled, axis=-1)
        picked = jnp.take_along_axis(scaled, labels[:, None], axis=-1)[:, 0]
        ce = jnp.mean(lse - picked)
        if conf is None:
            return ce
        pred = jnp.argmax(logits, axis=-1)
        correct = pred == labels
        n_c = jnp.sum(correct).astype(jnp.float32)
        n_i = jnp.float32(labels.shape[0]) - n_c
        c = conf.reshape(-1)
        c_sum = jnp.sum(jnp.where(correct, c, 0.0))
        i_sum = jnp.sum(jnp.where(correct, 0.0, c))
        c_loss = jnp.where(n_c > 0, (n_c - c_sum) / jnp.maximum(n_c, 1.0), 0.0)
        i_loss = jnp.where(n_i > 0, i_sum / jnp.maximum(n_i, 1.0), 0.0)
        conf_loss = jnp.where(n_c > 0, c_loss + i_loss, 0.0)
        return ce + confidence_reg_weight * conf_loss

    # --- small case: single-block fused path (with & without confidence) ---
    batch, num_domains = 8, 5
    logits_s = jax.random.normal(k1, (batch, num_domains), dtype=jnp.float32)
    labels_s = jax.random.randint(k2, (batch,), 0, num_domains, dtype=jnp.int32)
    conf_s = jax.random.uniform(k3, (batch, 1), dtype=jnp.float32)

    loss_s = domain_classification_loss(
        logits_s, labels_s, conf_s,
        temperature=temperature, confidence_reg_weight=confidence_reg_weight)
    jax.block_until_ready(loss_s)
    loss_s_nc = domain_classification_loss(
        logits_s, labels_s, None,
        temperature=temperature, confidence_reg_weight=confidence_reg_weight)
    jax.block_until_ready(loss_s_nc)

    assert jnp.allclose(loss_s, ref_loss(logits_s, labels_s, conf_s), atol=1e-5)
    assert jnp.allclose(loss_s_nc, ref_loss(logits_s, labels_s, None), atol=1e-5)

    # --- larger case: gridded ("parallel" batch axis) path ---
    batch_l = 512
    logits_l = jax.random.normal(k4, (batch_l, num_domains), dtype=jnp.float32)
    labels_l = jax.random.randint(k5, (batch_l,), 0, num_domains, dtype=jnp.int32)
    conf_l = jax.random.uniform(k6, (batch_l, 1), dtype=jnp.float32)

    loss_l = domain_classification_loss(
        logits_l, labels_l, conf_l,
        temperature=temperature, confidence_reg_weight=confidence_reg_weight,
        block_b=128)
    jax.block_until_ready(loss_l)
    loss_l_nc = domain_classification_loss(
        logits_l, labels_l, None,
        temperature=temperature, confidence_reg_weight=confidence_reg_weight,
        block_b=128)
    jax.block_until_ready(loss_l_nc)

    assert jnp.allclose(loss_l, ref_loss(logits_l, labels_l, conf_l), atol=1e-4)
    assert jnp.allclose(loss_l_nc, ref_loss(logits_l, labels_l, None), atol=1e-4)

    print("KERNEL_OK")
</pallas_src>

<mosaic_0001>
module attributes {stable_mosaic.version = 11 : i64} {
  func.func @_fused_loss_kernel(%arg0: memref<5x8xf32, #tpu.memory_space<vmem>>, %arg1: memref<1x8xi32, #tpu.memory_space<vmem>>, %arg2: memref<1x8xf32, #tpu.memory_space<vmem>>, %arg3: memref<1x1xf32, #tpu.memory_space<smem>>) attributes {dimension_semantics = [], scalar_prefetch = 0 : i64, scratch_operands = 0 : i64, tpu.core_type = #tpu.core_type<tc>} {
    %c0 = arith.constant 0 : index
    %c0_0 = arith.constant 0 : index
    %0 = vector.load %arg0[%c0, %c0_0] : memref<5x8xf32, #tpu.memory_space<vmem>>, vector<5x8xf32>
    %c0_1 = arith.constant 0 : index
    %c0_2 = arith.constant 0 : index
    %1 = vector.load %arg1[%c0_1, %c0_2] : memref<1x8xi32, #tpu.memory_space<vmem>>, vector<1x8xi32>
    %2 = tpu.iota {dimensions = array<i32: 0>} : vector<5x8xi32>
    %3 = vector.broadcast %1 : vector<1x8xi32> to vector<5x8xi32>
    %4 = arith.cmpi eq, %2, %3 : vector<5x8xi32>
    %cst = arith.constant 0.666666686 : f32
    %5 = vector.broadcast %cst : f32 to vector<5x8xf32>
    %6 = arith.mulf %0, %5 : vector<5x8xf32>
    %cst_3 = arith.constant dense<0xFF800000> : vector<8xf32>
    %7 = vector.multi_reduction <maximumf>, %6, %cst_3 [0] : vector<5x8xf32> to vector<8xf32>
    %8 = vector.shape_cast %7 : vector<8xf32> to vector<1x8xf32>
    %cst_4 = arith.constant 0xFF800000 : f32
    %9 = vector.broadcast %cst_4 : f32 to vector<5x8xf32>
    %10 = arith.select %4, %6, %9 : vector<5x8xi1>, vector<5x8xf32>
    %cst_5 = arith.constant dense<0xFF800000> : vector<8xf32>
    %11 = vector.multi_reduction <maximumf>, %10, %cst_5 [0] : vector<5x8xf32> to vector<8xf32>
    %12 = vector.shape_cast %11 : vector<8xf32> to vector<1x8xf32>
    %13 = vector.broadcast %8 : vector<1x8xf32> to vector<5x8xf32>
    %14 = arith.subf %6, %13 : vector<5x8xf32>
    %15 = math.exp %14 : vector<5x8xf32>
    %cst_6 = arith.constant dense<0.000000e+00> : vector<8xf32>
    %16 = vector.multi_reduction <add>, %15, %cst_6 [0] : vector<5x8xf32> to vector<8xf32>
    %17 = vector.shape_cast %16 : vector<8xf32> to vector<1x8xf32>
    %18 = math.log %17 : vector<1x8xf32>
    %19 = arith.addf %8, %18 : vector<1x8xf32>
    %20 = arith.subf %19, %12 : vector<1x8xf32>
    %21 = vector.shape_cast %20 : vector<1x8xf32> to vector<1x1x8xf32>
    %cst_7 = arith.constant dense<0.000000e+00> : vector<1xf32>
    %22 = vector.multi_reduction <add>, %21, %cst_7 [1, 2] : vector<1x1x8xf32> to vector<1xf32>
    %23 = vector.shape_cast %22 : vector<1xf32> to vector<1x1x1xf32>
    %24 = vector.extract %23[0, 0, 0] : f32 from vector<1x1x1xf32>
    %c0_8 = arith.constant 0 : index
    %c0_9 = arith.constant 0 : index
    %25 = vector.load %arg2[%c0_8, %c0_9] : memref<1x8xf32, #tpu.memory_space<vmem>>, vector<1x8xf32>
    %26 = vector.broadcast %8 : vector<1x8xf32> to vector<5x8xf32>
    %27 = arith.cmpf oeq, %6, %26 : vector<5x8xf32>
    %c5_i32 = arith.constant 5 : i32
    %28 = vector.broadcast %c5_i32 : i32 to vector<5x8xi32>
    %29 = arith.select %27, %2, %28 : vector<5x8xi1>, vector<5x8xi32>
    %cst_10 = arith.constant dense<2147483647> : vector<8xi32>
    %30 = vector.multi_reduction <minsi>, %29, %cst_10 [0] : vector<5x8xi32> to vector<8xi32>
    %31 = vector.shape_cast %30 : vector<8xi32> to vector<1x8xi32>
    %32 = arith.cmpi eq, %31, %1 : vector<1x8xi32>
    %33 = arith.extui %32 : vector<1x8xi1> to vector<1x8xi32>
    %34 = arith.sitofp %33 : vector<1x8xi32> to vector<1x8xf32>
    %35 = vector.shape_cast %34 : vector<1x8xf32> to vector<1x1x8xf32>
    %cst_11 = arith.constant dense<0.000000e+00> : vector<1xf32>
    %36 = vector.multi_reduction <add>, %35, %cst_11 [1, 2] : vector<1x1x8xf32> to vector<1xf32>
    %37 = vector.shape_cast %36 : vector<1xf32> to vector<1x1x1xf32>
    %38 = vector.extract %37[0, 0, 0] : f32 from vector<1x1x1xf32>
    %39 = arith.mulf %25, %34 : vector<1x8xf32>
    %40 = vector.shape_cast %39 : vector<1x8xf32> to vector<1x1x8xf32>
    %cst_12 = arith.constant dense<0.000000e+00> : vector<1xf32>
    %41 = vector.multi_reduction <add>, %40, %cst_12 [1, 2] : vector<1x1x8xf32> to vector<1xf32>
    %42 = vector.shape_cast %41 : vector<1xf32> to vector<1x1x1xf32>
    %43 = vector.extract %42[0, 0, 0] : f32 from vector<1x1x1xf32>
    %44 = vector.shape_cast %25 : vector<1x8xf32> to vector<1x1x8xf32>
    %cst_13 = arith.constant dense<0.000000e+00> : vector<1xf32>
    %45 = vector.multi_reduction <add>, %44, %cst_13 [1, 2] : vector<1x1x8xf32> to vector<1xf32>
    %46 = vector.shape_cast %45 : vector<1xf32> to vector<1x1x1xf32>
    %47 = vector.extract %46[0, 0, 0] : f32 from vector<1x1x1xf32>
    %cst_14 = arith.constant 1.250000e-01 : f32
    %48 = arith.mulf %24, %cst_14 : f32
    %cst_15 = arith.constant 8.000000e+00 : f32
    %49 = arith.subf %cst_15, %38 : f32
    %50 = arith.subf %47, %43 : f32
    %51 = arith.subf %38, %43 : f32
    %cst_16 = arith.constant 1.000000e+00 : f32
    %52 = arith.maximumf %38, %cst_16 : f32
    %53 = arith.divf %51, %52 : f32
    %cst_17 = arith.constant 0.000000e+00 : f32
    %54 = arith.cmpf ogt, %49, %cst_17 : f32
    %cst_18 = arith.constant 1.000000e+00 : f32
    %55 = arith.maximumf %49, %cst_18 : f32
    %56 = arith.divf %50, %55 : f32
    %cst_19 = arith.constant 0.000000e+00 : f32
    %57 = arith.select %54, %56, %cst_19 : f32
    %cst_20 = arith.constant 0.000000e+00 : f32
    %58 = arith.cmpf ogt, %38, %cst_20 : f32
    %59 = arith.addf %53, %57 : f32
    %cst_21 = arith.constant 0.000000e+00 : f32
    %60 = arith.select %58, %59, %cst_21 : f32
    %cst_22 = arith.constant 1.000000e-01 : f32
    %61 = arith.mulf %cst_22, %60 : f32
    %62 = arith.addf %48, %61 : f32
    %c0_23 = arith.constant 0 : index
    %c0_24 = arith.constant 0 : index
    %63 = memref.load %arg3[%c0_23, %c0_24] : memref<1x1xf32, #tpu.memory_space<smem>>
    memref.store %62, %arg3[%c0_23, %c0_24] : memref<1x1xf32, #tpu.memory_space<smem>>
    return
  }
}

</mosaic_0001>

<llo_original>
// kernel: tpu_custom_call.1
$region0: #{tpu_custom_call.1}
  #allocation0 [shape = 'u32[]', space=smem, size = 0x4, offset = 0x4, fixed_abs, tag = 'smem constant byte address 0x4 - core index']
  #allocation1 [shape = 'u32[144,128]{1,0:T(1,128)}', space=vmem, size = 0x12000, scoped, tag = 'internal scratch']
  %s0 = inlined_call_operand.hbm [shape: f32[5,8], index: 0, kind: input, shape index: {}]
  %s1 = inlined_call_operand.vmem [shape: s32[1,8], index: 1, kind: input, shape index: {}]
  %s2 = inlined_call_operand.vmem [shape: f32[1,8], index: 2, kind: input, shape index: {}]
  %s3 = inlined_call_operand.hbm [shape: f32[1,1], index: 3, kind: output, shape index: {}]
  %s4 = sld [smem:[#allocation0]]
  $region26: #{tpu_custom_call.1} parent=0
    _
  %s6 = ssub.s32 1, %s4
  %s7 = scalar_select 0, %s6, %s4
  $region1: #{tpu_custom_call.1} parent=0
    #allocation2 [shape = 'u8[4096]{0}', space=vmem, size = 0x1000, scoped, tag = 'input window, operand 0, single buffered']
    #allocation3 [shape = 's32[1]{0}', space=sflag, size = 0x4, scoped, tag = 'scoped memory for tpu_custom_call.1']
    #allocation4 [shape = 's32[1]{0}', space=sflag, size = 0x4, scoped, tag = 'scoped memory for tpu_custom_call.1']
    #allocation5 [shape = 'u8[512]{0}', space=smem, size = 0x200, scoped, tag = 'output window, operand 0, single buffered']
    %8 = vsyncpa [#allocation3], 0
    %9 = vsyncpa [#allocation4], 0
    // Predicated region
    $region2: #{tpu_custom_call.1} parent=1 // pred_check
      _
    $region3: #{tpu_custom_call.1} parent=1 // pred_check_branch
      %11 = sbr.rel (0) target = $region5
    $region4: #{tpu_custom_call.1} parent=1 // pred_region
      %s13 = ssub.s32 128, 128
      %14 = vsyncadd [#allocation3], %s13
      %s16 = sshll.u32 [#allocation2], 4
      %s17 = int_to_ptr.vmem [resolvable:$true] %s16
      %19 = dma.hbm_to_vmem [thread:$0]  %s0, 128, %s17, [#allocation3]
    $region5: #{tpu_custom_call.1} parent=1 // pred_fallthru
      _
    // Predicated region
    $region6: #{tpu_custom_call.1} parent=1 // pred_check
      _
    $region7: #{tpu_custom_call.1} parent=1 // pred_check_branch
      %21 = sbr.rel (0) target = $region9
    $region8: #{tpu_custom_call.1} parent=1 // pred_region
      _
    $region9: #{tpu_custom_call.1} parent=1 // pred_fallthru
      _
    // Predicated region
    $region10: #{tpu_custom_call.1} parent=1 // pred_check
      _
    $region11: #{tpu_custom_call.1} parent=1 // pred_check_branch
      %23 = sbr.rel (0) target = $region13
    $region12: #{tpu_custom_call.1} parent=1 // pred_region
      _
    $region13: #{tpu_custom_call.1} parent=1 // pred_fallthru
      _
    // Predicated region
    $region14: #{tpu_custom_call.1} parent=1 // pred_check
      _
    $region15: #{tpu_custom_call.1} parent=1 // pred_check_branch
      %25 = sbr.rel (0) target = $region17
    $region16: #{tpu_custom_call.1} parent=1 // pred_region
      %26 = dma.done [#allocation3], 128
    $region17: #{tpu_custom_call.1} parent=1 // pred_fallthru
      _
    %v27 = vld [vmem:[#allocation2] sm:$0x1f]
    %v28 = vld [vmem:[%s1] sm:$0x1]
    %v29 = vlaneseq
    %v30 = vshrl.u32 %v29, 7
    %v31 = vlaneseq
    %v32 = vshrl.u32 %v31, 7
    %v33 = vsub.s32 0, %v32
    %v34 = vrot.slane %v28, %v33
    %vm35 = vcmp.eq.s32.totalorder %v30, %v34
    %v36 = vmul.f32 %v27, 0.6666667
    %vm37 = vcmask 61440
    %v38 = vsel %vm37, %v36, -inf
    %v39 = vrot.slane %v38, 4
    %v40 = vmax.f32 %v38, %v39
    %v41 = vrot.slane %v40, 2
    %v42 = vmax.f32 %v40, %v41
    %v43 = vrot.slane %v42, 1
    %v44 = vmax.f32 %v42, %v43
    %v45 = vsel %vm35, %v36, -inf
    %v46 = vsel %vm37, %v45, -inf
    %v47 = vrot.slane %v46, 4
    %v48 = vmax.f32 %v46, %v47
    %v49 = vrot.slane %v48, 2
    %v50 = vmax.f32 %v48, %v49
    %v51 = vrot.slane %v50, 1
    %v52 = vmax.f32 %v50, %v51
    %v53 = vsub.f32 %v36, %v44
    %v54 = vmul.f32 %v53, 1.442695
    %v55 = vpow.pop %v54
    %v56 = vsel %vm37, %v55, 0.0
    %v57 = vrot.slane %v56, 4
    %v58 = vadd.f32 %v56, %v57
    %v59 = vrot.slane %v58, 2
    %v60 = vadd.f32 %v58, %v59
    %v61 = vrot.slane %v60, 1
    %v62 = vadd.f32 %v60, %v61
    %v63 = vlog2.pop %v62
    %v64 = vmul.f32 %v63, 0.6931472
    %v65 = vadd.f32 %v44, %v64
    %v66 = vsub.f32 %v65, %v52
    %vm67 = vcmask 57344
    %v68 = vsel %vm67, %v66, 0.0
    %69 = vadd.xlane.f32.xlu0 %v68
    %v70 = vpop.xlane.xlu0 %69
    %v71 = vrot.slane %v70, 4
    %v72 = vadd.f32 %v70, %v71
    %v73 = vrot.slane %v72, 2
    %v74 = vadd.f32 %v72, %v73
    %v75 = vrot.slane %v74, 1
    %v76 = vadd.f32 %v74, %v75
    %s77 = vtos %v76
    %v78 = vld [vmem:[%s2] sm:$0x1]
    %vm79 = vcmp.eq.f32.partialorder %v36, %v44
    %v80 = vsel %vm79, %v30, 5
    %v81 = vsel %vm37, %v80, 2147483647
    %v82 = vrot.slane %v81, 4
    %vm83 = vcmp.lt.s32.totalorder %v81, %v82
    %v84 = vsel %vm83, %v81, %v82
    %v85 = vrot.slane %v84, 2
    %vm86 = vcmp.lt.s32.totalorder %v84, %v85
    %v87 = vsel %vm86, %v84, %v85
    %v88 = vrot.slane %v87, 1
    %vm89 = vcmp.lt.s32.totalorder %v87, %v88
    %v90 = vsel %vm89, %v87, %v88
    %vm91 = vcmp.eq.s32.totalorder %v90, %v28
    %v92 = vsel %vm91, 1, 0
    %v93 = vcvt.s32.f32 %v92
    %v94 = vsel %vm67, %v93, 0.0
    %95 = vadd.xlane.f32.xlu0 %v94
    %v96 = vpop.xlane.xlu0 %95
    %v97 = vrot.slane %v96, 4
    %v98 = vadd.f32 %v96, %v97
    %v99 = vrot.slane %v98, 2
    %v100 = vadd.f32 %v98, %v99
    %v101 = vrot.slane %v100, 1
    %v102 = vadd.f32 %v100, %v101
    %s103 = vtos %v102
    %v104 = vmul.f32 %v78, %v93
    %v105 = vsel %vm67, %v104, 0.0
    %106 = vadd.xlane.f32.xlu0 %v105
    %v107 = vpop.xlane.xlu0 %106
    %v108 = vrot.slane %v107, 4
    %v109 = vadd.f32 %v107, %v108
    %v110 = vrot.slane %v109, 2
    %v111 = vadd.f32 %v109, %v110
    %v112 = vrot.slane %v111, 1
    %v113 = vadd.f32 %v111, %v112
    %s114 = vtos %v113
    %v115 = vsel %vm67, %v78, 0.0
    %116 = vadd.xlane.f32.xlu0 %v115
    %v117 = vpop.xlane.xlu0 %116
    %v118 = vrot.slane %v117, 4
    %v119 = vadd.f32 %v117, %v118
    %v120 = vrot.slane %v119, 2
    %v121 = vadd.f32 %v119, %v120
    %v122 = vrot.slane %v121, 1
    %v123 = vadd.f32 %v121, %v122
    %s124 = vtos %v123
    %s125 = smul.f32 %s77, 0.125
    %s126 = ssub.f32 8.0, %s103
    %s127 = ssub.f32 %s124, %s114
    %s128 = ssub.f32 %s103, %s114
    %s129 = smax.f32 %s103, 1.0
    %v130 = vstv %s129
    %v131 = vrcp.pop %v130
    %s132 = vtos %v131
    %s133 = smul.f32 %s128, %s132
    %p134 = scmp.gt.f32.partialorder %s126, 0.0
    %s135 = smax.f32 %s126, 1.0
    %v136 = vstv %s135
    %v137 = vrcp.pop %v136
    %s138 = vtos %v137
    %s139 = smul.f32 %s127, %s138
    %s140 = scalar_select %p134, %s139, 0.0
    %p141 = scmp.gt.f32.partialorder %s103, 0.0
    %s142 = sadd.f32 %s133, %s140
    %s143 = scalar_select %p141, %s142, 0.0
    %s144 = smul.f32 %s143, 0.1
    %s145 = sadd.f32 %s125, %s144
    %s146 = scalar_lea.smem [#allocation5], 0
    %147 = sst [smem:[%s146]] %s145
    // Predicated region
    $region18: #{tpu_custom_call.1} parent=1 // pred_check
      _
    $region19: #{tpu_custom_call.1} parent=1 // pred_check_branch
      %149 = sbr.rel (0) target = $region21
    $region20: #{tpu_custom_call.1} parent=1 // pred_region
      %s151 = ssub.s32 16, 16
      %152 = vsyncadd [#allocation4], %s151
      %155 = dma.smem_to_hbm [#allocation5], 16, %s3, [#allocation4]
    $region21: #{tpu_custom_call.1} parent=1 // pred_fallthru
      _
    // Predicated region
    $region22: #{tpu_custom_call.1} parent=1 // pred_check
      _
    $region23: #{tpu_custom_call.1} parent=1 // pred_check_branch
      %157 = sbr.rel (0) target = $region25
    $region24: #{tpu_custom_call.1} parent=1 // pred_region
      %158 = dma.done [#allocation4], 16
    $region25: #{tpu_custom_call.1} parent=1 // pred_fallthru
      _
    %159 = sfence
    %160 = vsyncpa [#allocation3], 1
    %161 = vsyncpa [#allocation4], 1

</llo_original>
